<compile_context>
chip_gen: v6e
topology: v6e:2x2x1
jax: 0.10.0
libtpu: 0.0.40
codegen_flags: <defaults>
</compile_context>

<pallas_src>
import functools

import jax
import jax.numpy as jnp
from jax.experimental import pallas as pl
from jax.experimental.pallas import tpu as pltpu

SCALING_FACTOR = 1.8      # params['scaling_factor']
_NORM_EPS = 1e-12         # F.normalize default eps


def _round_up(x, m):
    return (x + m - 1) // m * m


# ---------------------------------------------------------------------------
# Stage 1: H = [ x@W1^T + b1  |  scale * L2norm(x@W2^T + b2) ]  (lane-padded)
# ---------------------------------------------------------------------------
def _feature_kernel(x_ref, w_ref, b_ref, h_ref, *, half):
    h = jnp.dot(x_ref[...], w_ref[...],
                preferred_element_type=jnp.float32) + b_ref[...]
    # lanes [half, 2*half) hold the linear2 branch -> L2 normalize * scale.
    lane = jax.lax.broadcasted_iota(jnp.int32, h.shape, 1)
    branch2 = lane >= half
    sumsq = jnp.sum(jnp.where(branch2, h * h, 0.0), axis=1, keepdims=True)
    # F.normalize: x / max(||x||, eps) == x * rsqrt(max(||x||^2, eps^2))
    inv = jax.lax.rsqrt(jnp.maximum(sumsq, _NORM_EPS * _NORM_EPS))
    h = jnp.where(branch2, h * (SCALING_FACTOR * inv), h)
    h_ref[...] = h.astype(h_ref.dtype)


# ---------------------------------------------------------------------------
# Stage 2: tiled dense propagation  O = A_hat @ H  (k = reduction axis)
# ---------------------------------------------------------------------------
def _propagate_kernel(a_ref, h_ref, o_ref, acc_ref):
    k = pl.program_id(1)

    @pl.when(k == 0)
    def _():
        acc_ref[...] = jnp.zeros_like(acc_ref)

    acc_ref[...] += jnp.dot(a_ref[...], h_ref[...],
                            preferred_element_type=jnp.float32)

    @pl.when(k == pl.num_programs(1) - 1)
    def _():
        o_ref[...] = acc_ref[...].astype(o_ref.dtype)


def encoder_forward(x, w1, b1, w2, b2, a_hat, *,
                    prop_dtype=jnp.float32, tile=512):
    """Pallas VGNAE encoder forward. Returns (x, x_) like the torch module."""
    n, c_in = x.shape
    c_out = w1.shape[0]

    # Lane-pad the concatenated feature axis to a multiple of 128.
    f_pad = max(128, _round_up(2 * c_out, 128))
    half = f_pad // 2

    # Pre-transpose + pack weights once in glue (no in-kernel .T).
    w_cat = jnp.zeros((c_in, f_pad), jnp.float32)
    w_cat = w_cat.at[:, :c_out].set(w1.T.astype(jnp.float32))
    w_cat = w_cat.at[:, half:half + c_out].set(w2.T.astype(jnp.float32))
    b_cat = jnp.zeros((1, f_pad), jnp.float32)
    b_cat = b_cat.at[:, :c_out].set(b1.astype(jnp.float32))
    b_cat = b_cat.at[:, half:half + c_out].set(b2.astype(jnp.float32))

    # Row tiling / node padding (padded rows/cols are zero -> no contribution).
    use_bf16 = jnp.dtype(prop_dtype) == jnp.dtype(jnp.bfloat16)
    row_align = 16 if use_bf16 else 8
    if n <= tile:
        tm = _round_up(max(n, row_align), row_align)
        n_pad = tm
    else:
        tm = tile                               # multiple of 128
        n_pad = _round_up(n, tile)
    tk = tm

    x_pad = jnp.zeros((n_pad, c_in), jnp.float32).at[:n].set(
        x.astype(jnp.float32))
    a_pad = jnp.zeros((n_pad, n_pad), jnp.float32).at[:n, :n].set(
        a_hat.astype(jnp.float32)).astype(prop_dtype)

    # ---- stage 1: per-node features (gridded over row tiles) ----
    h = pl.pallas_call(
        functools.partial(_feature_kernel, half=half),
        out_shape=jax.ShapeDtypeStruct((n_pad, f_pad), prop_dtype),
        grid=(n_pad // tm,),
        in_specs=[pl.BlockSpec((tm, c_in), lambda i: (i, 0)),
                  pl.BlockSpec((c_in, f_pad), lambda i: (0, 0)),
                  pl.BlockSpec((1, f_pad), lambda i: (0, 0))],
        out_specs=pl.BlockSpec((tm, f_pad), lambda i: (i, 0)),
        compiler_params=pltpu.CompilerParams(
            dimension_semantics=("parallel",)),
    )(x_pad, w_cat, b_cat)

    # ---- stage 2: tiled A_hat @ H, single pass over A for both branches ----
    out = pl.pallas_call(
        _propagate_kernel,
        out_shape=jax.ShapeDtypeStruct((n_pad, f_pad), jnp.float32),
        grid=(n_pad // tm, n_pad // tk),
        in_specs=[pl.BlockSpec((tm, tk), lambda i, k: (i, k)),
                  pl.BlockSpec((tk, f_pad), lambda i, k: (k, 0))],
        out_specs=pl.BlockSpec((tm, f_pad), lambda i, k: (i, 0)),
        scratch_shapes=[pltpu.VMEM((tm, f_pad), jnp.float32)],
        compiler_params=pltpu.CompilerParams(
            dimension_semantics=("parallel", "arbitrary")),
    )(a_pad, h)

    x_out = out[:n, half:half + c_out]    # VGNAE "x"  (linear2 -> norm -> prop)
    xlin_out = out[:n, :c_out]            # VGNAE "x_" (linear1 -> prop)
    return x_out, xlin_out


# ---------------------------------------------------------------------------
# Glue: dense A_hat = D^-1/2 (A + I) D^-1/2 (APPNP(K=1, alpha=0) == A_hat @ x)
# ---------------------------------------------------------------------------
def build_gcn_norm_adj(edge_index, num_nodes):
    src = edge_index[0]
    dst = edge_index[1]
    adj = jnp.zeros((num_nodes, num_nodes), jnp.float32).at[dst, src].add(1.0)
    adj = jnp.minimum(adj, 1.0)                          # coalesce duplicates
    adj = jnp.maximum(adj, jnp.eye(num_nodes, dtype=jnp.float32))  # self loops
    deg = jnp.sum(adj, axis=1)
    d_inv_sqrt = jnp.where(deg > 0, jax.lax.rsqrt(deg), 0.0)
    return d_inv_sqrt[:, None] * adj * d_inv_sqrt[None, :]


def _reference(x, w1, b1, w2, b2, a_hat):
    hp = jax.lax.Precision.HIGHEST
    h1 = jnp.dot(x, w1.T, precision=hp) + b1
    x_ = jnp.dot(a_hat, h1, precision=hp)
    h2 = jnp.dot(x, w2.T, precision=hp) + b2
    nrm = jnp.maximum(jnp.sqrt(jnp.sum(h2 * h2, axis=1, keepdims=True)), 1e-12)
    xo = jnp.dot(a_hat, h2 / nrm * SCALING_FACTOR, precision=hp)
    return xo, x_


def _make_case(key, n, c_in, c_out, e):
    k_x, k_w1, k_b1, k_w2, k_b2, k_e1, k_e2 = jax.random.split(key, 7)
    x = jax.random.normal(k_x, (n, c_in), jnp.float32)
    bound = 1.0 / jnp.sqrt(jnp.float32(c_in))
    w1 = jax.random.uniform(k_w1, (c_out, c_in), jnp.float32, -bound, bound)
    b1 = jax.random.uniform(k_b1, (c_out,), jnp.float32, -bound, bound)
    w2 = jax.random.uniform(k_w2, (c_out, c_in), jnp.float32, -bound, bound)
    b2 = jax.random.uniform(k_b2, (c_out,), jnp.float32, -bound, bound)
    src = jax.random.randint(k_e1, (e,), 0, n)
    dst = jax.random.randint(k_e2, (e,), 0, n)
    edge_index = jnp.stack([jnp.concatenate([src, dst]),
                            jnp.concatenate([dst, src])], axis=0)
    a_hat = build_gcn_norm_adj(edge_index, n)
    return x, w1, b1, w2, b2, a_hat


if __name__ == "__main__":
    key = jax.random.PRNGKey(0)
    k1, k2 = jax.random.split(key)

    # --- case 1: small, single tile (grid = (1,1)) ---
    x, w1, b1, w2, b2, a_hat = _make_case(k1, n=8, c_in=16, c_out=32, e=12)
    out_x, out_xlin = encoder_forward(x, w1, b1, w2, b2, a_hat)
    jax.block_until_ready((out_x, out_xlin))
    ref_x, ref_xlin = _reference(x, w1, b1, w2, b2, a_hat)
    assert jnp.allclose(out_x, ref_x, atol=2e-3, rtol=2e-3)
    assert jnp.allclose(out_xlin, ref_xlin, atol=2e-3, rtol=2e-3)

    # --- case 1b: bf16 propagation inputs (v6e/v7x fast path), f32 accumulate ---
    out_x16, out_xlin16 = encoder_forward(x, w1, b1, w2, b2, a_hat,
                                          prop_dtype=jnp.bfloat16)
    jax.block_until_ready((out_x16, out_xlin16))
    assert jnp.allclose(out_x16, ref_x, atol=5e-2, rtol=5e-2)
    assert jnp.allclose(out_xlin16, ref_xlin, atol=5e-2, rtol=5e-2)

    # --- case 2: larger graph so the propagation grid is really tiled (3x3) ---
    x2, w12, b12, w22, b22, a2 = _make_case(k2, n=600, c_in=48, c_out=32, e=2400)
    out_x2, out_xlin2 = encoder_forward(x2, w12, b12, w22, b22, a2, tile=256)
    jax.block_until_ready((out_x2, out_xlin2))
    ref_x2, ref_xlin2 = _reference(x2, w12, b12, w22, b22, a2)
    assert jnp.allclose(out_x2, ref_x2, atol=2e-3, rtol=2e-3)
    assert jnp.allclose(out_xlin2, ref_xlin2, atol=2e-3, rtol=2e-3)

    print("KERNEL_OK")
</pallas_src>

<mosaic_0001>
module attributes {stable_mosaic.version = 11 : i64} {
  func.func @_feature_kernel(%arg0: i32, %arg1: memref<8x16xf32, #tpu.memory_space<vmem>>, %arg2: memref<16x128xf32, #tpu.memory_space<vmem>>, %arg3: memref<1x128xf32, #tpu.memory_space<vmem>>, %arg4: memref<8x128xf32, #tpu.memory_space<vmem>>) attributes {dimension_semantics = [#tpu.dimension_semantics<parallel>], iteration_bounds = array<i64: 1>, scalar_prefetch = 0 : i64, scratch_operands = 0 : i64, tpu.core_type = #tpu.core_type<tc>, window_params = [{transform_indices = @transform_0, window_bounds = array<i64: 8, 16>}, {pipeline_mode = #tpu.pipeline_mode<synchronous>, transform_indices = @transform_1, window_bounds = array<i64: 16, 128>}, {pipeline_mode = #tpu.pipeline_mode<synchronous>, transform_indices = @transform_2, window_bounds = array<i64: 1, 128>}, {transform_indices = @transform_3, window_bounds = array<i64: 8, 128>}]} {
    %c0 = arith.constant 0 : index
    %c0_0 = arith.constant 0 : index
    %0 = vector.load %arg1[%c0, %c0_0] : memref<8x16xf32, #tpu.memory_space<vmem>>, vector<8x16xf32>
    %c0_1 = arith.constant 0 : index
    %c0_2 = arith.constant 0 : index
    %1 = vector.load %arg2[%c0_1, %c0_2] : memref<16x128xf32, #tpu.memory_space<vmem>>, vector<16x128xf32>
    %cst = arith.constant dense<0.000000e+00> : vector<8x128xf32>
    %2 = tpu.matmul %0, %1, %cst {dimension_numbers = #tpu.dot_dimension_numbers<[1], [0], [0], [1], [0, 0, 1, 1], [], []>} : vector<8x16xf32>, vector<16x128xf32>, vector<8x128xf32> -> vector<8x128xf32>
    %c0_3 = arith.constant 0 : index
    %c0_4 = arith.constant 0 : index
    %3 = vector.load %arg3[%c0_3, %c0_4] : memref<1x128xf32, #tpu.memory_space<vmem>>, vector<1x128xf32>
    %4 = vector.broadcast %3 : vector<1x128xf32> to vector<8x128xf32>
    %5 = arith.addf %2, %4 : vector<8x128xf32>
    %6 = tpu.iota {dimensions = array<i32: 1>} : vector<8x128xi32>
    %c64_i32 = arith.constant 64 : i32
    %7 = vector.broadcast %c64_i32 : i32 to vector<8x128xi32>
    %8 = arith.cmpi sge, %6, %7 : vector<8x128xi32>
    %9 = arith.mulf %5, %5 : vector<8x128xf32>
    %cst_5 = arith.constant 0.000000e+00 : f32
    %10 = vector.broadcast %cst_5 : f32 to vector<8x128xf32>
    %11 = arith.select %8, %9, %10 : vector<8x128xi1>, vector<8x128xf32>
    %cst_6 = arith.constant dense<0.000000e+00> : vector<8xf32>
    %12 = vector.multi_reduction <add>, %11, %cst_6 [1] : vector<8x128xf32> to vector<8xf32>
    %13 = vector.shape_cast %12 : vector<8xf32> to vector<8x1xf32>
    %cst_7 = arith.constant 1.000000e-24 : f32
    %14 = vector.broadcast %cst_7 : f32 to vector<8x1xf32>
    %15 = arith.maximumf %13, %14 : vector<8x1xf32>
    %16 = math.rsqrt %15 : vector<8x1xf32>
    %cst_8 = arith.constant 1.800000e+00 : f32
    %17 = vector.broadcast %cst_8 : f32 to vector<8x1xf32>
    %18 = arith.mulf %17, %16 : vector<8x1xf32>
    %19 = vector.broadcast %18 : vector<8x1xf32> to vector<8x128xf32>
    %20 = arith.mulf %5, %19 : vector<8x128xf32>
    %21 = arith.select %8, %20, %5 : vector<8x128xi1>, vector<8x128xf32>
    %c0_9 = arith.constant 0 : index
    %c0_10 = arith.constant 0 : index
    %22 = vector.load %arg4[%c0_9, %c0_10] : memref<8x128xf32, #tpu.memory_space<vmem>>, vector<8x128xf32>
    tpu.vector_store %arg4[%c0_9, %c0_10], %21 {strides = array<i32>} : memref<8x128xf32, #tpu.memory_space<vmem>>, vector<8x128xf32>,
    return
  }
  func.func @transform_0(%arg0: i32) -> (i32, i32) {
    %c0_i32 = arith.constant 0 : i32
    %c0_i32_0 = arith.constant 0 : i32
    return %arg0, %c0_i32 : i32, i32
  }
  func.func @transform_1(%arg0: i32) -> (i32, i32) {
    %c0_i32 = arith.constant 0 : i32
    %c0_i32_0 = arith.constant 0 : i32
    %c0_i32_1 = arith.constant 0 : i32
    return %c0_i32, %c0_i32_0 : i32, i32
  }
  func.func @transform_2(%arg0: i32) -> (i32, i32) {
    %c0_i32 = arith.constant 0 : i32
    %c0_i32_0 = arith.constant 0 : i32
    %c0_i32_1 = arith.constant 0 : i32
    return %c0_i32, %c0_i32_0 : i32, i32
  }
  func.func @transform_3(%arg0: i32) -> (i32, i32) {
    %c0_i32 = arith.constant 0 : i32
    %c0_i32_0 = arith.constant 0 : i32
    return %arg0, %c0_i32 : i32, i32
  }
}

</mosaic_0001>

<llo_original>
// kernel: tpu_custom_call.1
$region0: #{tpu_custom_call.1}
  #allocation0 [shape = 'u32[]', space=smem, size = 0x4, offset = 0x4, fixed_abs, tag = 'smem constant byte address 0x4 - core index']
  #allocation1 [shape = 'u32[144,128]{1,0:T(1,128)}', space=vmem, size = 0x12000, scoped, tag = 'internal scratch']
  %s0 = inlined_call_operand.hbm [shape: f32[8,16], index: 0, kind: input, shape index: {}]
  %s1 = inlined_call_operand.hbm [shape: f32[16,128], index: 1, kind: input, shape index: {}]
  %s2 = inlined_call_operand.vmem [shape: f32[1,128], index: 2, kind: input, shape index: {}]
  %s3 = inlined_call_operand.hbm [shape: f32[8,128], index: 3, kind: output, shape index: {}]
  %s4 = sld [smem:[#allocation0]]
  $region30: #{tpu_custom_call.1} parent=0
    _
  %s6 = ssub.s32 1, %s4
  %s7 = scalar_select 0, %s6, %s4
  $region1: #{tpu_custom_call.1} parent=0
    #allocation2 [shape = 'u8[4096]{0}', space=vmem, size = 0x1000, scoped, tag = 'input window, operand 0, single buffered']
    #allocation3 [shape = 's32[1]{0}', space=sflag, size = 0x4, scoped, tag = 'scoped memory for tpu_custom_call.1']
    #allocation4 [shape = 's32[1]{0}', space=sflag, size = 0x4, scoped, tag = 'scoped memory for tpu_custom_call.1']
    #allocation5 [shape = 'u8[8192]{0}', space=vmem, size = 0x2000, scoped, tag = 'input window, operand 1, single buffered']
    #allocation6 [shape = 's32[1]{0}', space=sflag, size = 0x4, scoped, tag = 'scoped memory for tpu_custom_call.1']
    #allocation7 [shape = 'u8[4096]{0}', space=vmem, size = 0x1000, scoped, tag = 'output window, operand 0, single buffered']
    %8 = vsyncpa [#allocation3], 0
    %9 = vsyncpa [#allocation6], 0
    %10 = vsyncpa [#allocation4], 0
    // Predicated region
    $region2: #{tpu_custom_call.1} parent=1 // pred_check
      _
    $region3: #{tpu_custom_call.1} parent=1 // pred_check_branch
      %12 = sbr.rel (0) target = $region5
    $region4: #{tpu_custom_call.1} parent=1 // pred_region
      %s14 = ssub.s32 128, 128
      %15 = vsyncadd [#allocation3], %s14
      %s17 = sshll.u32 [#allocation2], 4
      %s18 = int_to_ptr.vmem [resolvable:$true] %s17
      %20 = dma.hbm_to_vmem [thread:$0]  %s0, 128, %s18, [#allocation3]
    $region5: #{tpu_custom_call.1} parent=1 // pred_fallthru
      _
    // Predicated region
    $region6: #{tpu_custom_call.1} parent=1 // pred_check
      _
    $region7: #{tpu_custom_call.1} parent=1 // pred_check_branch
      %22 = sbr.rel (0) target = $region9
    $region8: #{tpu_custom_call.1} parent=1 // pred_region
      %s24 = ssub.s32 256, 256
      %25 = vsyncadd [#allocation6], %s24
      %s26 = sshll.u32 [#allocation5], 4
      %s27 = int_to_ptr.vmem [resolvable:$true] %s26
      %32 = dma.hbm_to_vmem [thread:$0]  %s1, 256, %s27, [#allocation6], 128, 128, 8
    $region9: #{tpu_custom_call.1} parent=1 // pred_fallthru
      _
    // Predicated region
    $region10: #{tpu_custom_call.1} parent=1 // pred_check
      _
    $region11: #{tpu_custom_call.1} parent=1 // pred_check_branch
      %34 = sbr.rel (0) target = $region13
    $region12: #{tpu_custom_call.1} parent=1 // pred_region
      _
    $region13: #{tpu_custom_call.1} parent=1 // pred_fallthru
      _
    // Predicated region
    $region14: #{tpu_custom_call.1} parent=1 // pred_check
      _
    $region15: #{tpu_custom_call.1} parent=1 // pred_check_branch
      %36 = sbr.rel (0) target = $region17
    $region16: #{tpu_custom_call.1} parent=1 // pred_region
      %37 = dma.done [#allocation3], 128
    $region17: #{tpu_custom_call.1} parent=1 // pred_fallthru
      _
    // Predicated region
    $region18: #{tpu_custom_call.1} parent=1 // pred_check
      _
    $region19: #{tpu_custom_call.1} parent=1 // pred_check_branch
      %39 = sbr.rel (0) target = $region21
    $region20: #{tpu_custom_call.1} parent=1 // pred_region
      %40 = dma.done [#allocation6], 256
    $region21: #{tpu_custom_call.1} parent=1 // pred_fallthru
      _
    %v41 = vld [vmem:[#allocation2] sm:$0xff]
    %v42 = vld [vmem:[#allocation5] sm:$0xff]
    %v43 = vld [vmem:[#allocation5 + $0x8] sm:$0xff]
    %v44 = vld [vmem:[%s2] sm:$0x1]
    %v46 = vlaneseq
    %v47 = vshrl.u32 %v46, 7
    %v48 = vsub.s32 0, %v47
    %v49 = vrot.slane %v44, %v48
    %vm51 = vcmask 130048
    %v53 = vsel %vm51, %v41, 0
    %55 = vmatprep.subr.mxu0 0.0
    %56 = vmatpush1.msra.mxu0 0.0
    %57 = vmatprep.subr.mxu0 0.0
    %58 = vmatpush1.msra.mxu0 0.0
    %59 = vmatprep.subr.mxu0 0.0
    %60 = vmatpush1.msra.mxu0 0.0
    %61 = vmatprep.subr.mxu0 0.0
    %62 = vmatpush1.msra.mxu0 0.0
    %63 = vmatprep.subr.mxu0 0.0
    %64 = vmatpush1.msra.mxu0 0.0
    %65 = vmatprep.subr.mxu0 0.0
    %66 = vmatpush1.msra.mxu0 0.0
    %67 = vmatprep.subr.mxu0 0.0
    %68 = vmatpush1.msra.mxu0 0.0
    %69 = vmatprep.subr.mxu0 0.0
    %70 = vmatpush1.msra.mxu0 0.0
    %71 = vmatprep.subr.mxu0 0.0
    %72 = vmatpush1.msra.mxu0 0.0
    %73 = vmatprep.subr.mxu0 0.0
    %74 = vmatpush1.msra.mxu0 0.0
    %75 = vmatprep.subr.mxu0 0.0
    %76 = vmatpush1.msra.mxu0 0.0
    %77 = vmatprep.subr.mxu0 0.0
    %78 = vmatpush1.msra.mxu0 0.0
    %79 = vmatprep.subr.mxu0 0.0
    %80 = vmatpush1.msra.mxu0 0.0
    %81 = vmatprep.subr.mxu0 0.0
    %82 = vmatpush1.msra.mxu0 0.0
    %83 = vmatprep.subr.mxu0 0.0
    %84 = vmatpush1.msra.mxu0 %v43
    %85 = vmatprep.subr.mxu0 0.0
    %86 = vmatpush1.msra.mxu0 %v42
    %87 = vmatprep.subr.mxu0 0.0
    %88 = vmatpush2.msra.mxu0 0.0
    %89 = vmatprep.subr.mxu0 0.0
    %90 = vmatpush2.msra.mxu0 0.0
    %91 = vmatprep.subr.mxu0 0.0
    %92 = vmatpush2.msra.mxu0 0.0
    %93 = vmatprep.subr.mxu0 0.0
    %94 = vmatpush2.msra.mxu0 0.0
    %95 = vmatprep.subr.mxu0 0.0
    %96 = vmatpush2.msra.mxu0 0.0
    %97 = vmatprep.subr.mxu0 0.0
    %98 = vmatpush2.msra.mxu0 0.0
    %99 = vmatprep.subr.mxu0 0.0
    %100 = vmatpush2.msra.mxu0 0.0
    %101 = vmatprep.subr.mxu0 0.0
    %102 = vmatpush2.msra.mxu0 0.0
    %103 = vmatprep.subr.mxu0 0.0
    %104 = vmatpush2.msra.mxu0 0.0
    %105 = vmatprep.subr.mxu0 0.0
    %106 = vmatpush2.msra.mxu0 0.0
    %107 = vmatprep.subr.mxu0 0.0
    %108 = vmatpush2.msra.mxu0 0.0
    %109 = vmatprep.subr.mxu0 0.0
    %110 = vmatpush2.msra.mxu0 0.0
    %111 = vmatprep.subr.mxu0 0.0
    %112 = vmatpush2.msra.mxu0 0.0
    %113 = vmatprep.subr.mxu0 0.0
    %114 = vmatpush2.msra.mxu0 0.0
    %115 = vmatprep.subr.mxu0 0.0
    %116 = vmatpush2.msra.mxu0 0.0
    %117 = vmatprep.subr.mxu0 0.0
    %118 = vmatpush2.msra.mxu0 0.0
    %119 = vmatprep.mubr.f32.mxu0 0.0
    %120 = vmatmul.mubr.f32.gmra.mxu0 %v53
    %v121 = vpop.f32.mrf.mxu0
    %v122 = vadd.f32 %v49, %v121
    %v123 = vpop.f32.mrf.mxu0
    %124 = vdwg.mxu0
    %v125 = vlaneseq
    %v126 = vand.u32 %v125, 127
    %vm127 = vcmp.ge.s32.totalorder %v126, 64
    %v128 = vmul.f32 %v122, %v122
    %v129 = vsel %vm127, %v128, 0.0
    %130 = vadd.xlane.f32.xlu0 %v129
    %v131 = vpop.xlane.xlu0 %130
    %v132 = vmax.f32 %v131, 1e-24
    %v133 = vrsqrt.pop %v132
    %v134 = vmul.f32 %v133, 1.8
    %v135 = vmul.f32 %v122, %v134
    %v136 = vsel %vm127, %v135, %v122
    %137 = vst [vmem:[#allocation7] sm:$0xff] %v136
    // Predicated region
    $region22: #{tpu_custom_call.1} parent=1 // pred_check
      _
    $region23: #{tpu_custom_call.1} parent=1 // pred_check_branch
      %139 = sbr.rel (0) target = $region25
    $region24: #{tpu_custom_call.1} parent=1 // pred_region
      %s141 = ssub.s32 128, 128
      %142 = vsyncadd [#allocation4], %s141
      %s144 = sshll.u32 [#allocation7], 4
      %s145 = int_to_ptr.vmem [resolvable:$true] %s144
      %147 = dma.vmem_to_hbm [thread:$0]  %s145, 128, %s3, [#allocation4]
    $region25: #{tpu_custom_call.1} parent=1 // pred_fallthru
      _
    // Predicated region
    $region26: #{tpu_custom_call.1} parent=1 // pred_check
      _
    $region27: #{tpu_custom_call.1} parent=1 // pred_check_branch
      %149 = sbr.rel (0) target = $region29
    $region28: #{tpu_custom_call.1} parent=1 // pred_region
      %150 = dma.done [#allocation4], 128
    $region29: #{tpu_custom_call.1} parent=1 // pred_fallthru
      _
    %151 = vsyncpa [#allocation3], 1
    %152 = vsyncpa [#allocation6], 1
    %153 = vsyncpa [#allocation4], 1

</llo_original>
